<compile_context>
chip_gen: v5e
topology: v5e:2x2
jax: 0.10.0
libtpu: 0.0.40
codegen_flags: <defaults>
</compile_context>

<pallas_src>
import functools

import numpy as np
import jax
import jax.numpy as jnp
from jax.experimental import pallas as pl
from jax.experimental.pallas import tpu as pltpu

# ---- config (mirrors config['model'] / config['diffusion']) ----
EMB_TIME_DIM = 32      # config['model']['timeemb']
EMB_FEATURE_DIM = 16   # config['model']['featureemb']  (== E of observed_region)
SIDE_DIM = EMB_TIME_DIM + EMB_FEATURE_DIM
NUM_STEPS = 50
BETA_START = 1e-4
BETA_END = 0.5
SCHEDULE = "quad"
HIDDEN = 32            # hidden width of the stand-in diff model
THRESHOLD = 0.5


def _beta_schedule():
    if SCHEDULE == "quad":
        beta = np.linspace(BETA_START ** 0.5, BETA_END ** 0.5, NUM_STEPS) ** 2
    else:
        beta = np.linspace(BETA_START, BETA_END, NUM_STEPS)
    alpha_hat = 1.0 - beta
    alpha = np.cumprod(alpha_hat)
    return beta, alpha_hat, alpha


def _make_params(key):
    k1, k2, k3, k4 = jax.random.split(key, 4)
    return {
        "wx": 0.1 * jax.random.normal(k1, (1, HIDDEN), jnp.float32),
        "ws_time": 0.1 * jax.random.normal(k2, (EMB_TIME_DIM, HIDDEN), jnp.float32),
        "ws_feat": 0.1 * jax.random.normal(k3, (EMB_FEATURE_DIM, HIDDEN), jnp.float32),
        "wo": 0.1 * jax.random.normal(k4, (1, HIDDEN), jnp.float32),
    }


def _fused_weight(params, use_feat):
    """Host-side fuse W = [wx; ws_time; (ws_feat)] -> (K, H), fed to MXU as bf16."""
    parts = [params["wx"], params["ws_time"]]
    if use_feat:
        parts.append(params["ws_feat"])
    return jnp.concatenate(parts, axis=0).astype(jnp.bfloat16)


def _freq_phase():
    """(2, Dt): row 0 = pairwise-repeated div_term, row 1 = phase (0 / pi/2)."""
    div_term = 1.0 / np.power(10000.0, np.arange(0, EMB_TIME_DIM, 2) / EMB_TIME_DIM)
    freq = np.repeat(div_term, 2).astype(np.float32)
    phase = np.tile(np.array([0.0, np.pi / 2.0]), EMB_TIME_DIM // 2).astype(np.float32)
    return jnp.asarray(np.stack([freq, phase], axis=0))


def _t_embedding(t):
    """Stand-in diffusion-step embedding: (B,) int -> (B, HIDDEN)."""
    half = HIDDEN // 2
    scale = jnp.asarray(10.0 ** (np.arange(half) * 4.0 / (half - 1)), jnp.float32)
    ang = t.astype(jnp.float32)[:, None] * scale[None, :]
    return jnp.concatenate([jnp.sin(ang), jnp.cos(ang)], axis=-1)


# ---------------------------------------------------------------------------
# shared in-kernel step: noising + side-info + stand-in diffmodel + MSE
# ---------------------------------------------------------------------------
def _step_loss(data, tp, noise, sqrt_a, sqrt_1ma, temb, feat, fp, w, wo):
    """MSE loss over all N = B*L points for one diffusion step.

    data/tp/noise : (N, 1) per-point columns
    sqrt_a/1ma    : (N, 1) (train, per batch element) or (1, 1) (valid, per step)
    temb          : (N, H) or (1, H)
    feat          : (N, E) or None (the `thresh < 0.5` branch drops it)
    fp            : (2, Dt)  rows = [freq, phase]
    w             : (K, H) bf16 fused weight  [wx; ws_time; (ws_feat)]
    wo            : (H, 1) f32 output projection
    """
    # forward-diffusion noising (sqrts hoisted to host)
    noisy = sqrt_a * data + sqrt_1ma * noise                        # (N, 1)

    # sinusoidal time embedding: sin on even lanes, cos (= sin(x + pi/2)) on odd
    freq = fp[0:1, :]
    phase = fp[1:2, :]
    time_embed = jnp.sin(tp * freq + phase)                         # (N, Dt)

    # fused [noisy | time_embed | feat] operand -> single MXU matmul (bf16 in, f32 acc)
    parts = [noisy, time_embed]
    if feat is not None:
        parts.append(feat)
    x = jnp.concatenate(parts, axis=-1)                             # (N, K)
    h = jnp.dot(x.astype(w.dtype), w,
                preferred_element_type=jnp.float32)                 # (N, H)
    h = jnp.maximum(h + temb, 0.0)                                  # f32 epilogue (v5e-safe)

    # output projection through the MXU (no VPU mul + lane reduce)
    predicted = jnp.dot(h, wo, preferred_element_type=jnp.float32)  # (N, 1)

    diff = noise - predicted
    return jnp.mean(diff * diff)                                    # nn.MSELoss()


# ---------------------------------------------------------------------------
# training path kernel (single step, random t per batch element)
# ---------------------------------------------------------------------------
def _train_kernel(use_feat, *refs):
    if use_feat:
        pp_ref, temb_ref, fp_ref, feat_ref, w_ref, wo_ref, loss_ref = refs
        feat = feat_ref[...]
    else:
        pp_ref, temb_ref, fp_ref, w_ref, wo_ref, loss_ref = refs
        feat = None

    pp = pp_ref[...]                                 # (N, 5): [data, tp, noise, sqrt_a, sqrt_1ma]
    loss = _step_loss(
        data=pp[:, 0:1], tp=pp[:, 1:2], noise=pp[:, 2:3],
        sqrt_a=pp[:, 3:4], sqrt_1ma=pp[:, 4:5],
        temb=temb_ref[...], feat=feat, fp=fp_ref[...],
        w=w_ref[...], wo=wo_ref[...])
    loss_ref[...] = jnp.reshape(loss, (1, 1))


# ---------------------------------------------------------------------------
# validation path kernel: all NUM_STEPS as one grid, loss accumulated in VMEM
# ---------------------------------------------------------------------------
def _valid_kernel(use_feat, inv_steps, *refs):
    if use_feat:
        (base_ref, scal_ref, noise_ref, temb_ref, fp_ref, feat_ref,
         w_ref, wo_ref, loss_ref, acc_ref) = refs
        feat = feat_ref[...]
    else:
        (base_ref, scal_ref, noise_ref, temb_ref, fp_ref,
         w_ref, wo_ref, loss_ref, acc_ref) = refs
        feat = None

    s = pl.program_id(0)
    base = base_ref[...]                             # (N, 2): [data, tp]  (step-invariant)
    scal = scal_ref[0]                               # (1, 2): [sqrt_a, sqrt_1ma] for step s
    loss = _step_loss(
        data=base[:, 0:1], tp=base[:, 1:2], noise=noise_ref[0],
        sqrt_a=scal[:, 0:1], sqrt_1ma=scal[:, 1:2],
        temb=temb_ref[0], feat=feat, fp=fp_ref[...],
        w=w_ref[...], wo=wo_ref[...])

    @pl.when(s == 0)
    def _():
        acc_ref[...] = jnp.zeros_like(acc_ref)

    acc_ref[...] += jnp.reshape(loss, (1, 1)) * inv_steps

    @pl.when(s == pl.num_programs(0) - 1)
    def _():
        loss_ref[...] = acc_ref[...]


# ---------------------------------------------------------------------------
# wrapper: CSDI_base.forward (is_train==1 -> calc_loss, else calc_loss_valid)
# ---------------------------------------------------------------------------
def csdi_base_forward(observed_data, observed_region, observed_tp, params,
                      rng_key, is_train=1):
    B, L = observed_data.shape
    _, E = observed_region.shape
    assert E == EMB_FEATURE_DIM
    N = B * L

    _, _, alpha_np = _beta_schedule()
    alpha = jnp.asarray(alpha_np, jnp.float32)

    # `thresh = np.random.rand()` is a host-side draw in the torch forward, so the
    # `side_info[:, :, emb_time_dim:] = 0` branch is a trace-time constant: bake
    # it in and drop the feature operand / its weight rows entirely when taken.
    thresh = float(np.random.rand())
    use_feat = thresh >= THRESHOLD

    fp = _freq_phase()                                             # (2, Dt)
    w = _fused_weight(params, use_feat)                            # (K, H) bf16
    wo = jnp.reshape(params["wo"], (HIDDEN, 1)).astype(jnp.float32)

    # lane-dense flattening: per-point tensors become N = B*L rows
    data_f = observed_data.astype(jnp.float32).reshape(N, 1)
    tp_f = observed_tp.astype(jnp.float32).reshape(N, 1)
    feat_f = None
    if use_feat:
        feat_f = jnp.broadcast_to(
            observed_region.astype(jnp.float32)[:, None, :], (B, L, E)).reshape(N, E)

    vmem = pl.BlockSpec(memory_space=pltpu.MemorySpace.VMEM)

    if is_train == 1:
        # ---- calc_loss: one random t per batch element ----
        k_t, k_noise = jax.random.split(rng_key)
        t = jax.random.randint(k_t, (B,), 0, NUM_STEPS)
        a_t = alpha[t][:, None]                                    # (B, 1)
        sqrt_a = jnp.sqrt(a_t)
        sqrt_1ma = jnp.sqrt(1.0 - a_t)
        noise = jax.random.normal(k_noise, (B, L), jnp.float32)
        temb = _t_embedding(t)                                     # (B, H)

        # pack the five per-point columns into a single operand (fewer tiny DMAs)
        pp = jnp.concatenate(
            [data_f, tp_f, noise.reshape(N, 1),
             jnp.broadcast_to(sqrt_a[:, None, :], (B, L, 1)).reshape(N, 1),
             jnp.broadcast_to(sqrt_1ma[:, None, :], (B, L, 1)).reshape(N, 1)],
            axis=-1)                                               # (N, 5)
        temb_pp = jnp.broadcast_to(temb[:, None, :], (B, L, HIDDEN)).reshape(N, HIDDEN)

        operands = [pp, temb_pp, fp] + ([feat_f] if use_feat else []) + [w, wo]
        loss = pl.pallas_call(
            functools.partial(_train_kernel, use_feat),
            out_shape=jax.ShapeDtypeStruct((1, 1), jnp.float32),
            in_specs=[vmem] * len(operands),
            out_specs=vmem,
        )(*operands)
        return loss[0, 0]

    # ---- calc_loss_valid: all NUM_STEPS fused into ONE pallas_call ----
    noise = jax.random.normal(rng_key, (NUM_STEPS, N, 1), jnp.float32)
    scal = jnp.stack([jnp.sqrt(alpha), jnp.sqrt(1.0 - alpha)],
                     axis=-1).reshape(NUM_STEPS, 1, 2)             # (S, 1, 2)
    temb = _t_embedding(jnp.arange(NUM_STEPS)).reshape(NUM_STEPS, 1, HIDDEN)
    base = jnp.concatenate([data_f, tp_f], axis=-1)                # (N, 2)

    zero2 = lambda s: (0, 0)
    in_specs = [
        pl.BlockSpec((N, 2), zero2),                               # base (step-invariant)
        pl.BlockSpec((1, 1, 2), lambda s: (s, 0, 0)),              # per-step sqrt_a / sqrt_1ma
        pl.BlockSpec((1, N, 1), lambda s: (s, 0, 0)),              # per-step noise
        pl.BlockSpec((1, 1, HIDDEN), lambda s: (s, 0, 0)),         # per-step t embedding
        pl.BlockSpec((2, EMB_TIME_DIM), zero2),                    # freq / phase
    ]
    operands = [base, scal, noise, temb, fp]
    if use_feat:
        in_specs.append(pl.BlockSpec((N, E), zero2))
        operands.append(feat_f)
    in_specs += [pl.BlockSpec(w.shape, zero2), pl.BlockSpec((HIDDEN, 1), zero2)]
    operands += [w, wo]

    loss = pl.pallas_call(
        functools.partial(_valid_kernel, use_feat, 1.0 / NUM_STEPS),
        grid=(NUM_STEPS,),
        out_shape=jax.ShapeDtypeStruct((1, 1), jnp.float32),
        in_specs=in_specs,
        out_specs=pl.BlockSpec((1, 1), zero2),
        scratch_shapes=[pltpu.VMEM((1, 1), jnp.float32)],
        compiler_params=pltpu.CompilerParams(
            dimension_semantics=("arbitrary",)),
    )(*operands)
    return loss[0, 0]


if __name__ == "__main__":
    np.random.seed(0)   # deterministic `thresh` draws for the demo
    key = jax.random.PRNGKey(0)
    k_data, k_region, k_params, k_train, k_valid = jax.random.split(key, 5)

    B, L = 2, 16
    observed_data = jax.random.normal(k_data, (B, L), jnp.float32)
    observed_region = jax.random.uniform(k_region, (B, EMB_FEATURE_DIM), jnp.float32)
    observed_tp = jnp.broadcast_to(jnp.arange(L, dtype=jnp.float32)[None, :], (B, L))

    params = _make_params(k_params)

    train_loss = csdi_base_forward(observed_data, observed_region, observed_tp,
                                   params, k_train, is_train=1)
    valid_loss = csdi_base_forward(observed_data, observed_region, observed_tp,
                                   params, k_valid, is_train=0)
    train_loss, valid_loss = jax.block_until_ready((train_loss, valid_loss))
    assert np.isfinite(float(train_loss)) and np.isfinite(float(valid_loss))
    print("KERNEL_OK")
</pallas_src>

<mosaic_0001>
module attributes {stable_mosaic.version = 11 : i64} {
  func.func @_train_kernel(%arg0: memref<32x5xf32, #tpu.memory_space<vmem>>, %arg1: memref<32x32xf32, #tpu.memory_space<vmem>>, %arg2: memref<2x32xf32, #tpu.memory_space<vmem>>, %arg3: memref<32x16xf32, #tpu.memory_space<vmem>>, %arg4: memref<49x32xbf16, #tpu.memory_space<vmem>>, %arg5: memref<32x1xf32, #tpu.memory_space<vmem>>, %arg6: memref<1x1xf32, #tpu.memory_space<vmem>>) attributes {dimension_semantics = [], scalar_prefetch = 0 : i64, scratch_operands = 0 : i64, tpu.core_type = #tpu.core_type<tc>} {
    %c0 = arith.constant 0 : index
    %c0_0 = arith.constant 0 : index
    %0 = vector.load %arg3[%c0, %c0_0] : memref<32x16xf32, #tpu.memory_space<vmem>>, vector<32x16xf32>
    %c0_1 = arith.constant 0 : index
    %c0_2 = arith.constant 0 : index
    %1 = vector.load %arg0[%c0_1, %c0_2] : memref<32x5xf32, #tpu.memory_space<vmem>>, vector<32x5xf32>
    %2 = vector.extract_strided_slice %1 {offsets = [0, 0], sizes = [32, 1], strides = [1, 1]} : vector<32x5xf32> to vector<32x1xf32>
    %3 = vector.extract_strided_slice %1 {offsets = [0, 1], sizes = [32, 1], strides = [1, 1]} : vector<32x5xf32> to vector<32x1xf32>
    %4 = vector.extract_strided_slice %1 {offsets = [0, 2], sizes = [32, 1], strides = [1, 1]} : vector<32x5xf32> to vector<32x1xf32>
    %5 = vector.extract_strided_slice %1 {offsets = [0, 3], sizes = [32, 1], strides = [1, 1]} : vector<32x5xf32> to vector<32x1xf32>
    %6 = vector.extract_strided_slice %1 {offsets = [0, 4], sizes = [32, 1], strides = [1, 1]} : vector<32x5xf32> to vector<32x1xf32>
    %c0_3 = arith.constant 0 : index
    %c0_4 = arith.constant 0 : index
    %7 = vector.load %arg1[%c0_3, %c0_4] : memref<32x32xf32, #tpu.memory_space<vmem>>, vector<32x32xf32>
    %c0_5 = arith.constant 0 : index
    %c0_6 = arith.constant 0 : index
    %8 = vector.load %arg2[%c0_5, %c0_6] : memref<2x32xf32, #tpu.memory_space<vmem>>, vector<2x32xf32>
    %c0_7 = arith.constant 0 : index
    %c0_8 = arith.constant 0 : index
    %9 = vector.load %arg4[%c0_7, %c0_8] : memref<49x32xbf16, #tpu.memory_space<vmem>>, vector<49x32xbf16>
    %c0_9 = arith.constant 0 : index
    %c0_10 = arith.constant 0 : index
    %10 = vector.load %arg5[%c0_9, %c0_10] : memref<32x1xf32, #tpu.memory_space<vmem>>, vector<32x1xf32>
    %11 = arith.mulf %5, %2 : vector<32x1xf32>
    %12 = arith.mulf %6, %4 : vector<32x1xf32>
    %13 = arith.addf %11, %12 : vector<32x1xf32>
    %14 = vector.extract_strided_slice %8 {offsets = [0, 0], sizes = [1, 32], strides = [1, 1]} : vector<2x32xf32> to vector<1x32xf32>
    %15 = vector.extract_strided_slice %8 {offsets = [1, 0], sizes = [1, 32], strides = [1, 1]} : vector<2x32xf32> to vector<1x32xf32>
    %16 = vector.broadcast %3 : vector<32x1xf32> to vector<32x32xf32>
    %17 = vector.broadcast %14 : vector<1x32xf32> to vector<32x32xf32>
    %18 = arith.mulf %16, %17 : vector<32x32xf32>
    %19 = vector.broadcast %15 : vector<1x32xf32> to vector<32x32xf32>
    %20 = arith.addf %18, %19 : vector<32x32xf32>
    %21 = math.sin %20 : vector<32x32xf32>
    %22 = tpu.concatenate %13, %21, %0 in 1 : vector<32x1xf32>, vector<32x32xf32>, vector<32x16xf32> -> vector<32x49xf32>
    %23 = arith.truncf %22 : vector<32x49xf32> to vector<32x49xbf16>
    %cst = arith.constant dense<0.000000e+00> : vector<32x32xf32>
    %24 = tpu.matmul %23, %9, %cst {dimension_numbers = #tpu.dot_dimension_numbers<[1], [0], [0], [1], [0, 0, 1, 1], [], []>} : vector<32x49xbf16>, vector<49x32xbf16>, vector<32x32xf32> -> vector<32x32xf32>
    %25 = arith.addf %24, %7 : vector<32x32xf32>
    %cst_11 = arith.constant 0.000000e+00 : f32
    %26 = vector.broadcast %cst_11 : f32 to vector<32x32xf32>
    %27 = arith.maximumf %25, %26 : vector<32x32xf32>
    %cst_12 = arith.constant dense<0.000000e+00> : vector<32x1xf32>
    %28 = tpu.matmul %27, %10, %cst_12 {dimension_numbers = #tpu.dot_dimension_numbers<[1], [0], [0], [1], [0, 0, 1, 1], [], []>} : vector<32x32xf32>, vector<32x1xf32>, vector<32x1xf32> -> vector<32x1xf32>
    %29 = arith.subf %4, %28 : vector<32x1xf32>
    %30 = arith.mulf %29, %29 : vector<32x1xf32>
    %31 = vector.shape_cast %30 : vector<32x1xf32> to vector<1x32x1xf32>
    %cst_13 = arith.constant dense<0.000000e+00> : vector<1xf32>
    %32 = vector.multi_reduction <add>, %31, %cst_13 [1, 2] : vector<1x32x1xf32> to vector<1xf32>
    %33 = vector.shape_cast %32 : vector<1xf32> to vector<1x1x1xf32>
    %34 = vector.extract %33[0, 0, 0] : f32 from vector<1x1x1xf32>
    %cst_14 = arith.constant 3.200000e+01 : f32
    %35 = arith.divf %34, %cst_14 : f32
    %36 = vector.broadcast %35 : f32 to vector<1x1xf32>
    %c0_15 = arith.constant 0 : index
    %c0_16 = arith.constant 0 : index
    %37 = vector.load %arg6[%c0_15, %c0_16] : memref<1x1xf32, #tpu.memory_space<vmem>>, vector<1x1xf32>
    tpu.vector_store %arg6[%c0_15, %c0_16], %36 {strides = array<i32>} : memref<1x1xf32, #tpu.memory_space<vmem>>, vector<1x1xf32>,
    return
  }
}

</mosaic_0001>

<llo_original>
// kernel: tpu_custom_call.1
$region0: #{tpu_custom_call.1}
  #allocation0 [shape = 'u32[]', space=smem, size = 0x4, offset = 0x4, fixed_abs, tag = 'smem constant byte address 0x4 - core index']
  #allocation1 [shape = 'u32[72,128]{1,0:T(1,128)}', space=vmem, size = 0x9000, scoped, tag = 'internal scratch']
  %s0 = inlined_call_operand.vmem [shape: f32[32,5], index: 0, kind: input, shape index: {}]
  %s1 = inlined_call_operand.vmem [shape: f32[32,32], index: 1, kind: input, shape index: {}]
  %s2 = inlined_call_operand.vmem [shape: f32[2,32], index: 2, kind: input, shape index: {}]
  %s3 = inlined_call_operand.vmem [shape: f32[32,16], index: 3, kind: input, shape index: {}]
  %s4 = inlined_call_operand.vmem [shape: bf16[49,32], index: 4, kind: input, shape index: {}]
  %s5 = inlined_call_operand.vmem [shape: f32[32,1], index: 5, kind: input, shape index: {}]
  %s6 = inlined_call_operand.hbm [shape: f32[1,1], index: 6, kind: output, shape index: {}]
  %s7 = sld [smem:[#allocation0]]
  $region34: #{tpu_custom_call.1} parent=0
    _
  %s9 = ssub.s32 1, %s7
  %s10 = scalar_select 0, %s9, %s7
  $region1: #{tpu_custom_call.1} parent=0
    #allocation2 [shape = 'u8[512]{0}', space=vmem, size = 0x400, scoped, tag = 'output window, operand 0, single buffered']
    #allocation3 [shape = 's32[1]{0}', space=sflag, size = 0x4, scoped, tag = 'scoped memory for tpu_custom_call.1']
    %11 = vsyncpa [#allocation3], 0
    // Predicated region
    $region2: #{tpu_custom_call.1} parent=1 // pred_check
      _
    $region3: #{tpu_custom_call.1} parent=1 // pred_check_branch
      %13 = sbr.rel (0) target = $region5
    $region4: #{tpu_custom_call.1} parent=1 // pred_region
      _
    $region5: #{tpu_custom_call.1} parent=1 // pred_fallthru
      _
    // Predicated region
    $region6: #{tpu_custom_call.1} parent=1 // pred_check
      _
    $region7: #{tpu_custom_call.1} parent=1 // pred_check_branch
      %15 = sbr.rel (0) target = $region9
    $region8: #{tpu_custom_call.1} parent=1 // pred_region
      _
    $region9: #{tpu_custom_call.1} parent=1 // pred_fallthru
      _
    // Predicated region
    $region10: #{tpu_custom_call.1} parent=1 // pred_check
      _
    $region11: #{tpu_custom_call.1} parent=1 // pred_check_branch
      %17 = sbr.rel (0) target = $region13
    $region12: #{tpu_custom_call.1} parent=1 // pred_region
      _
    $region13: #{tpu_custom_call.1} parent=1 // pred_fallthru
      _
    // Predicated region
    $region14: #{tpu_custom_call.1} parent=1 // pred_check
      _
    $region15: #{tpu_custom_call.1} parent=1 // pred_check_branch
      %19 = sbr.rel (0) target = $region17
    $region16: #{tpu_custom_call.1} parent=1 // pred_region
      _
    $region17: #{tpu_custom_call.1} parent=1 // pred_fallthru
      _
    // Predicated region
    $region18: #{tpu_custom_call.1} parent=1 // pred_check
      _
    $region19: #{tpu_custom_call.1} parent=1 // pred_check_branch
      %21 = sbr.rel (0) target = $region21
    $region20: #{tpu_custom_call.1} parent=1 // pred_region
      _
    $region21: #{tpu_custom_call.1} parent=1 // pred_fallthru
      _
    // Predicated region
    $region22: #{tpu_custom_call.1} parent=1 // pred_check
      _
    $region23: #{tpu_custom_call.1} parent=1 // pred_check_branch
      %23 = sbr.rel (0) target = $region25
    $region24: #{tpu_custom_call.1} parent=1 // pred_region
      _
    $region25: #{tpu_custom_call.1} parent=1 // pred_fallthru
      _
    %v25 = vld [vmem:[%s3] sm:$0xff]
    %v26 = vld [vmem:[%s3 + $0x8] sm:$0xff]
    %v27 = vld [vmem:[%s3 + $0x10] sm:$0xff]
    %v28 = vld [vmem:[%s3 + $0x18] sm:$0xff]
    %v29 = vld [vmem:[%s0] sm:$0xff]
    %v30 = vld [vmem:[%s0 + $0x8] sm:$0xff]
    %v31 = vld [vmem:[%s0 + $0x10] sm:$0xff]
    %v32 = vld [vmem:[%s0 + $0x18] sm:$0xff]
    %v33 = vld [vmem:[%s1] sm:$0xff]
    %v34 = vld [vmem:[%s1 + $0x8] sm:$0xff]
    %v35 = vld [vmem:[%s1 + $0x10] sm:$0xff]
    %v36 = vld [vmem:[%s1 + $0x18] sm:$0xff]
    %v37 = vld [vmem:[%s2] sm:$0x3]
    %v38 = vld [vmem:[%s4] sm:$0xf]
    %v39 = vld [vmem:[%s4 + $0x4] sm:$0xf]
    %v40 = vld [vmem:[%s4 + $0x8] sm:$0xf]
    %v41 = vld [vmem:[%s4 + $0xc] sm:$0xf]
    %v42 = vld [vmem:[%s4 + $0x10] sm:$0xf]
    %v43 = vld [vmem:[%s4 + $0x14] sm:$0xf]
    %v44 = vld [vmem:[%s4 + $0x18] sm:$0x1]
    %v45 = vld [vmem:[%s5] sm:$0xff]
    %v46 = vld [vmem:[%s5 + $0x8] sm:$0xff]
    %v47 = vld [vmem:[%s5 + $0x10] sm:$0xff]
    %v48 = vld [vmem:[%s5 + $0x18] sm:$0xff]
    %53 = vrot.lane.b32.xlu0 %v29, 3
    %v54 = vpop.permute.xlu0 %53
    %55 = vrot.lane.b32.xlu0 %v30, 3
    %v56 = vpop.permute.xlu0 %55
    %57 = vrot.lane.b32.xlu0 %v31, 3
    %v58 = vpop.permute.xlu0 %57
    %59 = vrot.lane.b32.xlu0 %v32, 3
    %v60 = vpop.permute.xlu0 %59
    %v65 = vmul.f32 %v29, %v54
    %v66 = vmul.f32 %v30, %v56
    %v67 = vmul.f32 %v31, %v58
    %v68 = vmul.f32 %v32, %v60
    %69 = vrot.lane.b32.xlu0 %v29, 2
    %v70 = vpop.permute.xlu0 %69
    %71 = vrot.lane.b32.xlu0 %v30, 2
    %v72 = vpop.permute.xlu0 %71
    %73 = vrot.lane.b32.xlu0 %v31, 2
    %v74 = vpop.permute.xlu0 %73
    %75 = vrot.lane.b32.xlu0 %v32, 2
    %v76 = vpop.permute.xlu0 %75
    %v81 = vmul.f32 %v29, %v70
    %v82 = vmul.f32 %v30, %v72
    %v83 = vmul.f32 %v31, %v74
    %v84 = vmul.f32 %v32, %v76
    %89 = vrot.lane.b32.xlu0 %v81, 127
    %v90 = vpop.permute.xlu0 %89
    %91 = vrot.lane.b32.xlu0 %v82, 127
    %v92 = vpop.permute.xlu0 %91
    %93 = vrot.lane.b32.xlu0 %v83, 127
    %v94 = vpop.permute.xlu0 %93
    %95 = vrot.lane.b32.xlu0 %v84, 127
    %v96 = vpop.permute.xlu0 %95
    %v101 = vadd.f32 %v65, %v90
    %v102 = vadd.f32 %v66, %v92
    %v103 = vadd.f32 %v67, %v94
    %v104 = vadd.f32 %v68, %v96
    %105 = vset.pattern.permute.xlu0 1
    %106 = vperm.xlu0 %105, %v29
    %v107 = vpop.permute.xlu0 %106
    %109 = vset.pattern.permute.xlu0 1
    %110 = vperm.xlu0 %109, %v30
    %v111 = vpop.permute.xlu0 %110
    %113 = vset.pattern.permute.xlu0 1
    %114 = vperm.xlu0 %113, %v31
    %v115 = vpop.permute.xlu0 %114
    %117 = vset.pattern.permute.xlu0 1
    %118 = vperm.xlu0 %117, %v32
    %v119 = vpop.permute.xlu0 %118
    %v121 = vperm.slane %v37, 0
    %v122 = vmul.f32 %v107, %v121
    %v123 = vmul.f32 %v111, %v121
    %v124 = vmul.f32 %v115, %v121
    %v125 = vmul.f32 %v119, %v121
    %v126 = vperm.slane %v37, 1
    %v127 = vadd.f32 %v122, %v126
    %v128 = vadd.f32 %v123, %v126
    %v129 = vadd.f32 %v124, %v126
    %v130 = vadd.f32 %v125, %v126
    %v131 = vand.u32 2147483647, %v127
    %vm132 = vcmp.le.f32.partialorder %v131, 0.7853982
    %vm133 = vcmp.lt.s32.totalorder %v127, 0
    %v134 = vand.u32 %v127, 2139095040
    %v135 = vshrl.u32 %v134, 23
    %v136 = vsub.s32 %v135, 127
    %v137 = vand.u32 2147483647, %v127
    %v138 = vand.u32 %v137, 8388607
    %v139 = vor.u32 %v138, 8388608
    %v140 = vsub.s32 0, %v139
    %v141 = vadd.s32 %v136, 1
    %vm142 = vcmp.gt.s32.totalorder %v141, 0
    %v143 = vsel %vm142, %v141, 0
    %v144 = vshrl.u32 %v143, 5
    %v145 = vand.u32 %v143, 31
    %v146 = vsub.s32 32, %v145
    %v147 = vshrl.u32 683565275, %v146
    %v148 = vshll.u32 683565275, %v145
    %v149 = vshrl.u32 2475754826, %v146
    %v150 = vor.u32 %v148, %v149
    %v151 = vshll.u32 2475754826, %v145
    %v152 = vshrl.u32 2131351028, %v146
    %v153 = vor.u32 %v151, %v152
    %v154 = vshll.u32 2131351028, %v145
    %v155 = vshrl.u32 2102212464, %v146
    %v156 = vor.u32 %v154, %v155
    %v157 = vshll.u32 2102212464, %v145
    %v158 = vshrl.u32 920167782, %v146
    %v159 = vor.u32 %v157, %v158
    %v160 = vshll.u32 920167782, %v145
    %v161 = vshrl.u32 1326507024, %v146
    %v162 = vor.u32 %v160, %v161
    %vm163 = vcmp.lt.s32.totalorder %v144, 1
    %vm164 = vcmp.lt.s32.totalorder %v144, 2
    %vm165 = vcmp.lt.s32.totalorder %v144, 3
    %vm166 = vcmp.lt.s32.totalorder %v144, 4
    %v167 = vsel %vm163, %v147, %v150
    %v168 = vsel %vm166, %v156, 2102212464
    %v169 = vsel %vm165, %v153, %v168
    %v170 = vsel %vm164, %v167, %v169
    %v171 = vsel %vm163, %v150, %v153
    %v172 = vsel %vm166, %v159, 920167782
    %v173 = vsel %vm165, %v156, %v172
    %v174 = vsel %vm164, %v171, %v173
    %v175 = vsel %vm163, %v153, %v156
    %v176 = vsel %vm166, %v162, 1326507024
    %v177 = vsel %vm165, %v159, %v176
    %v178 = vsel %vm164, %v175, %v177
    %v179 = vshll.u32 %v139, 8
    %v180 = vand.u32 %v179, 65535
    %v181 = vshrl.u32 %v179, 16
    %v182 = vand.u32 %v178, 65535
    %v183 = vshrl.u32 %v178, 16
    %v184 = vmul.u32 %v180, %v182
    %v185 = vmul.u32 %v180, %v183
    %v186 = vmul.u32 %v181, %v182
    %v187 = vmul.u32 %v181, %v183
    %v188 = vshll.u32 %v185, 16
    %v189 = vshrl.u32 %v185, 16
    %v190 = vshll.u32 %v186, 16
    %v191 = vshrl.u32 %v186, 16
    %vm192 = vc.u32 %v184, %v188
    %v193 = vsel %vm192, 1, 0
    %v194 = vadd.s32 %v184, %v188
    %v195 = vadd.s32 %v187, %v193
    %vm196 = vc.u32 %v194, %v190
    %v197 = vsel %vm196, 1, 0
    %v198 = vadd.s32 %v194, %v190
    %v199 = vadd.s32 %v195, %v197
    %v200 = vadd.s32 %v199, %v189
    %v201 = vadd.s32 %v200, %v191
    %v202 = vand.u32 %v179, 65535
    %v203 = vshrl.u32 %v179, 16
    %v204 = vand.u32 %v174, 65535
    %v205 = vshrl.u32 %v174, 16
    %v206 = vmul.u32 %v202, %v204
    %v207 = vmul.u32 %v202, %v205
    %v208 = vmul.u32 %v203, %v204
    %v209 = vmul.u32 %v203, %v205
    %v210 = vshll.u32 %v207, 16
    %v211 = vshrl.u32 %v207, 16
    %v212 = vshll.u32 %v208, 16
    %v213 = vshrl.u32 %v208, 16
    %vm214 = vc.u32 %v206, %v210
    %v215 = vsel %vm214, 1, 0
    %v216 = vadd.s32 %v206, %v210
    %v217 = vadd.s32 %v209, %v215
    %vm218 = vc.u32 %v216, %v212
    %v219 = vsel %vm218, 1, 0
    %v220 = vadd.s32 %v216, %v212
    %v221 = vadd.s32 %v217, %v219
    %v222 = vadd.s32 %v221, %v211
    %v223 = vadd.s32 %v222, %v213
    %v224 = vmul.u32 %v179, %v170
    %v225 = vadd.s32 %v201, %v220
    %vm226 = vc.u32 %v201, %v220
    %v227 = vadd.s32 %v223, 1
    %v228 = vsel %vm226, %v227, %v223
    %v229 = vadd.s32 %v224, %v228
    %v230 = vadd.s32 %v229, 536870912
    %v231 = vshrl.u32 %v230, 30
    %v232 = vshll.u32 %v231, 30
    %v233 = vsub.s32 %v229, %v232
    %vm234 = vcmp.lt.s32.totalorder %v233, 0
    %v235 = vsub.s32 0, %v233
    %v236 = vsel %vm234, %v235, %v233
    %v237 = vclz %v236
    %v238 = vsub.s32 %v237, 2
    %vm239 = vcmp.gt.s32.totalorder 0, %v238
    %v240 = vsel %vm239, 0, %v238
    %v241 = vsub.s32 32, %v240
    %v242 = vshll.u32 %v233, %v240
    %v243 = vshrl.u32 %v225, %v241
    %v244 = vor.u32 %v242, %v243
    %v245 = vsub.s32 4294967266, %v240
    %v246 = vadd.s32 %v245, 127
    %v247 = vshll.u32 %v246, 23
    %v248 = vor.u32 4788187, %v247
    %v249 = vand.u32 2147483647, %v248
    %v251 = vcvt.s32.f32 %v244
    %v252 = vmul.f32 %v251, %v249
    %v253 = vxor.u32 %v252, 2147483648
    %v254 = vsel %vm133, %v253, %v252
    %v255 = vsub.s32 4, %v231
    %v256 = vsel %vm133, %v255, %v231
    %v257 = vsel %vm132, %v127, %v254
    %v258 = vsel %vm132, 0, %v256
    %v259 = vmul.f32 %v257, %v257
    %v260 = vmul.f32 %v259, -0.001358992
    %v261 = vadd.f32 %v260, 0.041655596
    %v262 = vmul.f32 %v259, %v261
    %v263 = vadd.f32 %v262, -0.4999988
    %v264 = vmul.f32 %v259, %v263
    %v265 = vadd.f32 1.0, %v264
    %v266 = vmul.f32 %v257, %v257
    %v267 = vmul.f32 %v266, -0.00019511016
    %v268 = vadd.f32 %v267, 0.008332121
    %v269 = vmul.f32 %v266, %v268
    %v270 = vadd.f32 %v269, -0.16666654
    %v271 = vmul.f32 %v266, %v270
    %v272 = vadd.f32 %v271, 1.0
    %v273 = vmul.f32 %v272, %v257
    %vm274 = vweird.f32 %v127
    %v275 = vadd.s32 %v258, 3
    %v276 = vand.u32 %v275, 3
    %vm277 = vcmp.lt.s32.totalorder %v276, 2
    %vm278 = vcmp.eq.s32.totalorder %v276, 0
    %v279 = vxor.u32 %v273, 2147483648
    %v280 = vsel %vm278, %v265, %v279
    %vm281 = vcmp.eq.s32.totalorder %v276, 2
    %v282 = vxor.u32 %v265, 2147483648
    %v283 = vsel %vm281, %v282, %v273
    %v284 = vsel %vm277, %v280, %v283
    %v285 = vsel %vm274, nan, %v284
    %v286 = vand.u32 2147483647, %v128
    %vm287 = vcmp.le.f32.partialorder %v286, 0.7853982
    %vm288 = vcmp.lt.s32.totalorder %v128, 0
    %v289 = vand.u32 %v128, 2139095040
    %v290 = vshrl.u32 %v289, 23
    %v291 = vsub.s32 %v290, 127
    %v292 = vand.u32 2147483647, %v128
    %v293 = vand.u32 %v292, 8388607
    %v294 = vor.u32 %v293, 8388608
    %v295 = vsub.s32 0, %v294
    %v296 = vadd.s32 %v291, 1
    %vm297 = vcmp.gt.s32.totalorder %v296, 0
    %v298 = vsel %vm297, %v296, 0
    %v299 = vshrl.u32 %v298, 5
    %v300 = vand.u32 %v298, 31
    %v301 = vsub.s32 32, %v300
    %v302 = vshrl.u32 683565275, %v301
    %v303 = vshll.u32 683565275, %v300
    %v304 = vshrl.u32 2475754826, %v301
    %v305 = vor.u32 %v303, %v304
    %v306 = vshll.u32 2475754826, %v300
    %v307 = vshrl.u32 2131351028, %v301
    %v308 = vor.u32 %v306, %v307
    %v309 = vshll.u32 2131351028, %v300
    %v310 = vshrl.u32 2102212464, %v301
    %v311 = vor.u32 %v309, %v310
    %v312 = vshll.u32 2102212464, %v300
    %v313 = vshrl.u32 920167782, %v301
    %v314 = vor.u32 %v312, %v313
    %v315 = vshll.u32 920167782, %v300
    %v316 = vshrl.u32 1326507024, %v301
    %v317 = vor.u32 %v315, %v316
    %vm318 = vcmp.lt.s32.totalorder %v299, 1
    %vm319 = vcmp.lt.s32.totalorder %v299, 2
    %vm320 = vcmp.lt.s32.totalorder %v299, 3
    %vm321 = vcmp.lt.s32.totalorder %v299, 4
    %v322 = vsel %vm318, %v302, %v305
    %v323 = vsel %vm321, %v311, 2102212464
    %v324 = vsel %vm320, %v308, %v323
    %v325 = vsel %vm319, %v322, %v324
    %v326 = vsel %vm318, %v305, %v308
    %v327 = vsel %vm321, %v314, 920167782
    %v328 = vsel %vm320, %v311, %v327
    %v329 = vsel %vm319, %v326, %v328
    %v330 = vsel %vm318, %v308, %v311
    %v331 = vsel %vm321, %v317, 1326507024
    %v332 = vsel %vm320, %v314, %v331
    %v333 = vsel %vm319, %v330, %v332
    %v334 = vshll.u32 %v294, 8
    %v335 = vand.u32 %v334, 65535
    %v336 = vshrl.u32 %v334, 16
    %v337 = vand.u32 %v333, 65535
    %v338 = vshrl.u32 %v333, 16
    %v339 = vmul.u32 %v335, %v337
    %v340 = vmul.u32 %v335, %v338
    %v341 = vmul.u32 %v336, %v337
    %v342 = vmul.u32 %v336, %v338
    %v343 = vshll.u32 %v340, 16
    %v344 = vshrl.u32 %v340, 16
    %v345 = vshll.u32 %v341, 16
    %v346 = vshrl.u32 %v341, 16
    %vm347 = vc.u32 %v339, %v343
    %v348 = vsel %vm347, 1, 0
    %v349 = vadd.s32 %v339, %v343
    %v350 = vadd.s32 %v342, %v348
    %vm351 = vc.u32 %v349, %v345
    %v352 = vsel %vm351, 1, 0
    %v353 = vadd.s32 %v349, %v345
    %v354 = vadd.s32 %v350, %v352
    %v355 = vadd.s32 %v354, %v344
    %v356 = vadd.s32 %v355, %v346
    %v357 = vand.u32 %v334, 65535
    %v358 = vshrl.u32 %v334, 16
    %v359 = vand.u32 %v329, 65535
    %v360 = vshrl.u32 %v329, 16
    %v361 = vmul.u32 %v357, %v359
    %v362 = vmul.u32 %v357, %v360
    %v363 = vmul.u32 %v358, %v359
    %v364 = vmul.u32 %v358, %v360
    %v365 = vshll.u32 %v362, 16
    %v366 = vshrl.u32 %v362, 16
    %v367 = vshll.u32 %v363, 16
    %v368 = vshrl.u32 %v363, 16
    %vm369 = vc.u32 %v361, %v365
    %v370 = vsel %vm369, 1, 0
    %v371 = vadd.s32 %v361, %v365
    %v372 = vadd.s32 %v364, %v370
    %vm373 = vc.u32 %v371, %v367
    %v374 = vsel %vm373, 1, 0
    %v375 = vadd.s32 %v371, %v367
    %v376 = vadd.s32 %v372, %v374
    %v377 = vadd.s32 %v376, %v366
    %v378 = vadd.s32 %v377, %v368
    %v379 = vmul.u32 %v334, %v325
    %v380 = vadd.s32 %v356, %v375
    %vm381 = vc.u32 %v356, %v375
    %v382 = vadd.s32 %v378, 1
    %v383 = vsel %vm381, %v382, %v378
    %v384 = vadd.s32 %v379, %v383
    %v385 = vadd.s32 %v384, 536870912
    %v386 = vshrl.u32 %v385, 30
    %v387 = vshll.u32 %v386, 30
    %v388 = vsub.s32 %v384, %v387
    %vm389 = vcmp.lt.s32.totalorder %v388, 0
    %v390 = vsub.s32 0, %v388
    %v391 = vsel %vm389, %v390, %v388
    %v392 = vclz %v391
    %v393 = vsub.s32 %v392, 2
    %vm394 = vcmp.gt.s32.totalorder 0, %v393
    %v395 = vsel %vm394, 0, %v393
    %v396 = vsub.s32 32, %v395
    %v397 = vshll.u32 %v388, %v395
    %v398 = vshrl.u32 %v380, %v396
    %v399 = vor.u32 %v397, %v398
    %v400 = vsub.s32 4294967266, %v395
    %v401 = vadd.s32 %v400, 127
    %v402 = vshll.u32 %v401, 23
    %v403 = vor.u32 4788187, %v402
    %v404 = vand.u32 2147483647, %v403
    %v406 = vcvt.s32.f32 %v399
    %v407 = vmul.f32 %v406, %v404
    %v408 = vxor.u32 %v407, 2147483648
    %v409 = vsel %vm288, %v408, %v407
    %v410 = vsub.s32 4, %v386
    %v411 = vsel %vm288, %v410, %v386
    %v412 = vsel %vm287, %v128, %v409
    %v413 = vsel %vm287, 0, %v411
    %v414 = vmul.f32 %v412, %v412
    %v415 = vmul.f32 %v414, -0.001358992
    %v416 = vadd.f32 %v415, 0.041655596
    %v417 = vmul.f32 %v414, %v416
    %v418 = vadd.f32 %v417, -0.4999988
    %v419 = vmul.f32 %v414, %v418
    %v420 = vadd.f32 1.0, %v419
    %v421 = vmul.f32 %v412, %v412
    %v422 = vmul.f32 %v421, -0.00019511016
    %v423 = vadd.f32 %v422, 0.008332121
    %v424 = vmul.f32 %v421, %v423
    %v425 = vadd.f32 %v424, -0.16666654
    %v426 = vmul.f32 %v421, %v425
    %v427 = vadd.f32 %v426, 1.0
    %v428 = vmul.f32 %v427, %v412
    %vm429 = vweird.f32 %v128
    %v430 = vadd.s32 %v413, 3
    %v431 = vand.u32 %v430, 3
    %vm432 = vcmp.lt.s32.totalorder %v431, 2
    %vm433 = vcmp.eq.s32.totalorder %v431, 0
    %v434 = vxor.u32 %v428, 2147483648
    %v435 = vsel %vm433, %v420, %v434
    %vm436 = vcmp.eq.s32.totalorder %v431, 2
    %v437 = vxor.u32 %v420, 2147483648
    %v438 = vsel %vm436, %v437, %v428
    %v439 = vsel %vm432, %v435, %v438
    %v440 = vsel %vm429, nan, %v439
    %v441 = vand.u32 2147483647, %v129
    %vm442 = vcmp.le.f32.partialorder %v441, 0.7853982
    %vm443 = vcmp.lt.s32.totalorder %v129, 0
    %v444 = vand.u32 %v129, 2139095040
    %v445 = vshrl.u32 %v444, 23
    %v446 = vsub.s32 %v445, 127
    %v447 = vand.u32 2147483647, %v129
    %v448 = vand.u32 %v447, 8388607
    %v449 = vor.u32 %v448, 8388608
    %v450 = vsub.s32 0, %v449
    %v451 = vadd.s32 %v446, 1
    %vm452 = vcmp.gt.s32.totalorder %v451, 0
    %v453 = vsel %vm452, %v451, 0
    %v454 = vshrl.u32 %v453, 5
    %v455 = vand.u32 %v453, 31
    %v456 = vsub.s32 32, %v455
    %v457 = vshrl.u32 683565275, %v456
    %v458 = vshll.u32 683565275, %v455
    %v459 = vshrl.u32 2475754826, %v456
    %v460 = vor.u32 %v458, %v459
    %v461 = vshll.u32 2475754826, %v455
    %v462 = vshrl.u32 2131351028, %v456
    %v463 = vor.u32 %v461, %v462
    %v464 = vshll.u32 2131351028, %v455
    %v465 = vshrl.u32 2102212464, %v456
    %v466 = vor.u32 %v464, %v465
    %v467 = vshll.u32 2102212464, %v455
    %v468 = vshrl.u32 920167782, %v456
    %v469 = vor.u32 %v467, %v468
    %v470 = vshll.u32 920167782, %v455
    %v471 = vshrl.u32 1326507024, %v456
    %v472 = vor.u32 %v470, %v471
    %vm473 = vcmp.lt.s32.totalorder %v454, 1
    %vm474 = vcmp.lt.s32.totalorder %v454, 2
    %vm475 = vcmp.lt.s32.totalorder %v454, 3
    %vm476 = vcmp.lt.s32.totalorder %v454, 4
    %v477 = vsel %vm473, %v457, %v460
    %v478 = vsel %vm476, %v466, 2102212464
    %v479 = vsel %vm475, %v463, %v478
    %v480 = vsel %vm474, %v477, %v479
    %v481 = vsel %vm473, %v460, %v463
    %v482 = vsel %vm476, %v469, 920167782
    %v483 = vsel %vm475, %v466, %v482
    %v484 = vsel %vm474, %v481, %v483
    %v485 = vsel %vm473, %v463, %v466
    %v486 = vsel %vm476, %v472, 1326507024
    %v487 = vsel %vm475, %v469, %v486
    %v488 = vsel %vm474, %v485, %v487
    %v489 = vshll.u32 %v449, 8
    %v490 = vand.u32 %v489, 65535
    %v491 = vshrl.u32 %v489, 16
    %v492 = vand.u32 %v488, 65535
    %v493 = vshrl.u32 %v488, 16
    %v494 = vmul.u32 %v490, %v492
    %v495 = vmul.u32 %v490, %v493
    %v496 = vmul.u32 %v491, %v492
    %v497 = vmul.u32 %v491, %v493
    %v498 = vshll.u32 %v495, 16
    %v499 = vshrl.u32 %v495, 16
    %v500 = vshll.u32 %v496, 16
    %v501 = vshrl.u32 %v496, 16
    %vm502 = vc.u32 %v494, %v498
    %v503 = vsel %vm502, 1, 0
    %v504 = vadd.s32 %v494, %v498
    %v505 = vadd.s32 %v497, %v503
    %vm506 = vc.u32 %v504, %v500
    %v507 = vsel %vm506, 1, 0
    %v508 = vadd.s32 %v504, %v500
    %v509 = vadd.s32 %v505, %v507
    %v510 = vadd.s32 %v509, %v499
    %v511 = vadd.s32 %v510, %v501
    %v512 = vand.u32 %v489, 65535
    %v513 = vshrl.u32 %v489, 16
    %v514 = vand.u32 %v484, 65535
    %v515 = vshrl.u32 %v484, 16
    %v516 = vmul.u32 %v512, %v514
    %v517 = vmul.u32 %v512, %v515
    %v518 = vmul.u32 %v513, %v514
    %v519 = vmul.u32 %v513, %v515
    %v520 = vshll.u32 %v517, 16
    %v521 = vshrl.u32 %v517, 16
    %v522 = vshll.u32 %v518, 16
    %v523 = vshrl.u32 %v518, 16
    %vm524 = vc.u32 %v516, %v520
    %v525 = vsel %vm524, 1, 0
    %v526 = vadd.s32 %v516, %v520
    %v527 = vadd.s32 %v519, %v525
    %vm528 = vc.u32 %v526, %v522
    %v529 = vsel %vm528, 1, 0
    %v530 = vadd.s32 %v526, %v522
    %v531 = vadd.s32 %v527, %v529
    %v532 = vadd.s32 %v531, %v521
    %v533 = vadd.s32 %v532, %v523
    %v534 = vmul.u32 %v489, %v480
    %v535 = vadd.s32 %v511, %v530
    %vm536 = vc.u32 %v511, %v530
    %v537 = vadd.s32 %v533, 1
    %v538 = vsel %vm536, %v537, %v533
    %v539 = vadd.s32 %v534, %v538
    %v540 = vadd.s32 %v539, 536870912
    %v541 = vshrl.u32 %v540, 30
    %v542 = vshll.u32 %v541, 30
    %v543 = vsub.s32 %v539, %v542
    %vm544 = vcmp.lt.s32.totalorder %v543, 0
    %v545 = vsub.s32 0, %v543
    %v546 = vsel %vm544, %v545, %v543
    %v547 = vclz %v546
    %v548 = vsub.s32 %v547, 2
    %vm549 = vcmp.gt.s32.totalorder 0, %v548
    %v550 = vsel %vm549, 0, %v548
    %v551 = vsub.s32 32, %v550
    %v552 = vshll.u32 %v543, %v550
    %v553 = vshrl.u32 %v535, %v551
    %v554 = vor.u32 %v552, %v553
    %v555 = vsub.s32 4294967266, %v550
    %v556 = vadd.s32 %v555, 127
    %v557 = vshll.u32 %v556, 23
    %v558 = vor.u32 4788187, %v557
    %v559 = vand.u32 2147483647, %v558
    %v561 = vcvt.s32.f32 %v554
    %v562 = vmul.f32 %v561, %v559
    %v563 = vxor.u32 %v562, 2147483648
    %v564 = vsel %vm443, %v563, %v562
    %v565 = vsub.s32 4, %v541
    %v566 = vsel %vm443, %v565, %v541
    %v567 = vsel %vm442, %v129, %v564
    %v568 = vsel %vm442, 0, %v566
    %v569 = vmul.f32 %v567, %v567
    %v570 = vmul.f32 %v569, -0.001358992
    %v571 = vadd.f32 %v570, 0.041655596
    %v572 = vmul.f32 %v569, %v571
    %v573 = vadd.f32 %v572, -0.4999988
    %v574 = vmul.f32 %v569, %v573
    %v575 = vadd.f32 1.0, %v574
    %v576 = vmul.f32 %v567, %v567
    %v577 = vmul.f32 %v576, -0.00019511016
    %v578 = vadd.f32 %v577, 0.008332121
    %v579 = vmul.f32 %v576, %v578
    %v580 = vadd.f32 %v579, -0.16666654
    %v581 = vmul.f32 %v576, %v580
    %v582 = vadd.f32 %v581, 1.0
    %v583 = vmul.f32 %v582, %v567
    %vm584 = vweird.f32 %v129
    %v585 = vadd.s32 %v568, 3
    %v586 = vand.u32 %v585, 3
    %vm587 = vcmp.lt.s32.totalorder %v586, 2
    %vm588 = vcmp.eq.s32.totalorder %v586, 0
    %v589 = vxor.u32 %v583, 2147483648
    %v590 = vsel %vm588, %v575, %v589
    %vm591 = vcmp.eq.s32.totalorder %v586, 2
    %v592 = vxor.u32 %v575, 2147483648
    %v593 = vsel %vm591, %v592, %v583
    %v594 = vsel %vm587, %v590, %v593
    %v595 = vsel %vm584, nan, %v594
    %v596 = vand.u32 2147483647, %v130
    %vm597 = vcmp.le.f32.partialorder %v596, 0.7853982
    %vm598 = vcmp.lt.s32.totalorder %v130, 0
    %v599 = vand.u32 %v130, 2139095040
    %v600 = vshrl.u32 %v599, 23
    %v601 = vsub.s32 %v600, 127
    %v602 = vand.u32 2147483647, %v130
    %v603 = vand.u32 %v602, 8388607
    %v604 = vor.u32 %v603, 8388608
    %v605 = vsub.s32 0, %v604
    %v606 = vadd.s32 %v601, 1
    %vm607 = vcmp.gt.s32.totalorder %v606, 0
    %v608 = vsel %vm607, %v606, 0
    %v609 = vshrl.u32 %v608, 5
    %v610 = vand.u32 %v608, 31
    %v611 = vsub.s32 32, %v610
    %v612 = vshrl.u32 683565275, %v611
    %v613 = vshll.u32 683565275, %v610
    %v614 = vshrl.u32 2475754826, %v611
    %v615 = vor.u32 %v613, %v614
    %v616 = vshll.u32 2475754826, %v610
    %v617 = vshrl.u32 2131351028, %v611
    %v618 = vor.u32 %v616, %v617
    %v619 = vshll.u32 2131351028, %v610
    %v620 = vshrl.u32 2102212464, %v611
    %v621 = vor.u32 %v619, %v620
    %v622 = vshll.u32 2102212464, %v610
    %v623 = vshrl.u32 920167782, %v611
    %v624 = vor.u32 %v622, %v623
    %v625 = vshll.u32 920167782, %v610
    %v626 = vshrl.u32 1326507024, %v611
    %v627 = vor.u32 %v625, %v626
    %vm628 = vcmp.lt.s32.totalorder %v609, 1
    %vm629 = vcmp.lt.s32.totalorder %v609, 2
    %vm630 = vcmp.lt.s32.totalorder %v609, 3
    %vm631 = vcmp.lt.s32.totalorder %v609, 4
    %v632 = vsel %vm628, %v612, %v615
    %v633 = vsel %vm631, %v621, 2102212464
    %v634 = vsel %vm630, %v618, %v633
    %v635 = vsel %vm629, %v632, %v634
    %v636 = vsel %vm628, %v615, %v618
    %v637 = vsel %vm631, %v624, 920167782
    %v638 = vsel %vm630, %v621, %v637
    %v639 = vsel %vm629, %v636, %v638
    %v640 = vsel %vm628, %v618, %v621
    %v641 = vsel %vm631, %v627, 1326507024
    %v642 = vsel %vm630, %v624, %v641
    %v643 = vsel %vm629, %v640, %v642
    %v644 = vshll.u32 %v604, 8
    %v645 = vand.u32 %v644, 65535
    %v646 = vshrl.u32 %v644, 16
    %v647 = vand.u32 %v643, 65535
    %v648 = vshrl.u32 %v643, 16
    %v649 = vmul.u32 %v645, %v647
    %v650 = vmul.u32 %v645, %v648
    %v651 = vmul.u32 %v646, %v647
    %v652 = vmul.u32 %v646, %v648
    %v653 = vshll.u32 %v650, 16
    %v654 = vshrl.u32 %v650, 16
    %v655 = vshll.u32 %v651, 16
    %v656 = vshrl.u32 %v651, 16
    %vm657 = vc.u32 %v649, %v653
    %v658 = vsel %vm657, 1, 0
    %v659 = vadd.s32 %v649, %v653
    %v660 = vadd.s32 %v652, %v658
    %vm661 = vc.u32 %v659, %v655
    %v662 = vsel %vm661, 1, 0
    %v663 = vadd.s32 %v659, %v655
    %v664 = vadd.s32 %v660, %v662
    %v665 = vadd.s32 %v664, %v654
    %v666 = vadd.s32 %v665, %v656
    %v667 = vand.u32 %v644, 65535
    %v668 = vshrl.u32 %v644, 16
    %v669 = vand.u32 %v639, 65535
    %v670 = vshrl.u32 %v639, 16
    %v671 = vmul.u32 %v667, %v669
    %v672 = vmul.u32 %v667, %v670
    %v673 = vmul.u32 %v668, %v669
    %v674 = vmul.u32 %v668, %v670
    %v675 = vshll.u32 %v672, 16
    %v676 = vshrl.u32 %v672, 16
    %v677 = vshll.u32 %v673, 16
    %v678 = vshrl.u32 %v673, 16
    %vm679 = vc.u32 %v671, %v675
    %v680 = vsel %vm679, 1, 0
    %v681 = vadd.s32 %v671, %v675
    %v682 = vadd.s32 %v674, %v680
    %vm683 = vc.u32 %v681, %v677
    %v684 = vsel %vm683, 1, 0
    %v685 = vadd.s32 %v681, %v677
    %v686 = vadd.s32 %v682, %v684
    %v687 = vadd.s32 %v686, %v676
    %v688 = vadd.s32 %v687, %v678
    %v689 = vmul.u32 %v644, %v635
    %v690 = vadd.s32 %v666, %v685
    %vm691 = vc.u32 %v666, %v685
    %v692 = vadd.s32 %v688, 1
    %v693 = vsel %vm691, %v692, %v688
    %v694 = vadd.s32 %v689, %v693
    %v695 = vadd.s32 %v694, 536870912
    %v696 = vshrl.u32 %v695, 30
    %v697 = vshll.u32 %v696, 30
    %v698 = vsub.s32 %v694, %v697
    %vm699 = vcmp.lt.s32.totalorder %v698, 0
    %v700 = vsub.s32 0, %v698
    %v701 = vsel %vm699, %v700, %v698
    %v702 = vclz %v701
    %v703 = vsub.s32 %v702, 2
    %vm704 = vcmp.gt.s32.totalorder 0, %v703
    %v705 = vsel %vm704, 0, %v703
    %v706 = vsub.s32 32, %v705
    %v707 = vshll.u32 %v698, %v705
    %v708 = vshrl.u32 %v690, %v706
    %v709 = vor.u32 %v707, %v708
    %v710 = vsub.s32 4294967266, %v705
    %v711 = vadd.s32 %v710, 127
    %v712 = vshll.u32 %v711, 23
    %v713 = vor.u32 4788187, %v712
    %v714 = vand.u32 2147483647, %v713
    %v716 = vcvt.s32.f32 %v709
    %v717 = vmul.f32 %v716, %v714
    %v718 = vxor.u32 %v717, 2147483648
    %v719 = vsel %vm598, %v718, %v717
    %v720 = vsub.s32 4, %v696
    %v721 = vsel %vm598, %v720, %v696
    %v722 = vsel %vm597, %v130, %v719
    %v723 = vsel %vm597, 0, %v721
    %v724 = vmul.f32 %v722, %v722
    %v725 = vmul.f32 %v724, -0.001358992
    %v726 = vadd.f32 %v725, 0.041655596
    %v727 = vmul.f32 %v724, %v726
    %v728 = vadd.f32 %v727, -0.4999988
    %v729 = vmul.f32 %v724, %v728
    %v730 = vadd.f32 1.0, %v729
    %v731 = vmul.f32 %v722, %v722
    %v732 = vmul.f32 %v731, -0.00019511016
    %v733 = vadd.f32 %v732, 0.008332121
    %v734 = vmul.f32 %v731, %v733
    %v735 = vadd.f32 %v734, -0.16666654
    %v736 = vmul.f32 %v731, %v735
    %v737 = vadd.f32 %v736, 1.0
    %v738 = vmul.f32 %v737, %v722
    %vm739 = vweird.f32 %v130
    %v740 = vadd.s32 %v723, 3
    %v741 = vand.u32 %v740, 3
    %vm742 = vcmp.lt.s32.totalorder %v741, 2
    %vm743 = vcmp.eq.s32.totalorder %v741, 0
    %v744 = vxor.u32 %v738, 2147483648
    %v745 = vsel %vm743, %v730, %v744
    %vm746 = vcmp.eq.s32.totalorder %v741, 2
    %v747 = vxor.u32 %v730, 2147483648
    %v748 = vsel %vm746, %v747, %v738
    %v749 = vsel %vm742, %v745, %v748
    %v750 = vsel %vm739, nan, %v749
    %755 = vrot.lane.b32.xlu0 %v101, 125
    %v756 = vpop.permute.xlu0 %755
    %757 = vrot.lane.b32.xlu0 %v102, 125
    %v758 = vpop.permute.xlu0 %757
    %759 = vrot.lane.b32.xlu0 %v103, 125
    %v760 = vpop.permute.xlu0 %759
    %761 = vrot.lane.b32.xlu0 %v104, 125
    %v762 = vpop.permute.xlu0 %761
    %771 = vrot.lane.b32.xlu0 %v285, 1
    %v772 = vpop.permute.xlu0 %771
    %773 = vrot.lane.b32.xlu0 %v440, 1
    %v774 = vpop.permute.xlu0 %773
    %775 = vrot.lane.b32.xlu0 %v595, 1
    %v776 = vpop.permute.xlu0 %775
    %777 = vrot.lane.b32.xlu0 %v750, 1
    %v778 = vpop.permute.xlu0 %777
    %787 = vrot.lane.b32.xlu0 %v25, 33
    %v788 = vpop.permute.xlu0 %787
    %789 = vrot.lane.b32.xlu0 %v26, 33
    %v790 = vpop.permute.xlu0 %789
    %791 = vrot.lane.b32.xlu0 %v27, 33
    %v792 = vpop.permute.xlu0 %791
    %793 = vrot.lane.b32.xlu0 %v28, 33
    %v794 = vpop.permute.xlu0 %793
    %vm799 = vcmask 7168
    %v800 = vsel %vm799, %v756, %v772
    %v801 = vsel %vm799, %v758, %v774
    %v802 = vsel %vm799, %v760, %v776
    %v803 = vsel %vm799, %v762, %v778
    %vm804 = vcmask 269312
    %v805 = vsel %vm804, %v800, %v788
    %v806 = vsel %vm804, %v801, %v790
    %v807 = vsel %vm804, %v802, %v792
    %v808 = vsel %vm804, %v803, %v794
    %v809 = vpack.c.bf16 %v806, %v805
    %v810 = vpack.c.bf16 %v808, %v807
    %v818 = vunpack.c.l.b16 %v38
    %v819 = vunpack.c.l.b16 %v39
    %v820 = vunpack.c.l.b16 %v40
    %v821 = vunpack.c.l.b16 %v41
    %v822 = vunpack.c.l.b16 %v42
    %v823 = vunpack.c.l.b16 %v43
    %v824 = vunpack.c.l.b16 %v44
    %v825 = vpack.c.b16 %v819, %v818
    %v826 = vpack.c.b16 %v821, %v820
    %v827 = vpack.c.b16 %v823, %v822
    %v828 = vpack.c.b16 %v824, %v824
    %vm832 = vcmask 400384
    %v834 = vsel %vm832, %v809, 0
    %v837 = vsel %vm832, %v810, 0
    %vm839 = vcmask 1040384
    %v840 = vsel 0, 4294967295, 65535
    %v841 = vsel %vm839, %v840, 0
    %v843 = vand.u32 %v828, %v841
    %845 = vmatpush.bf16.msra.mxu0 0
    %846 = vmatpush.bf16.msra.mxu0 0
    %847 = vmatpush.bf16.msra.mxu0 0
    %848 = vmatpush.bf16.msra.mxu0 0
    %849 = vmatpush.bf16.msra.mxu0 %v843
    %850 = vmatpush.bf16.msra.mxu0 %v827
    %851 = vmatpush.bf16.msra.mxu0 %v826
    %852 = vmatpush.bf16.msra.mxu0 %v825
    %853 = vmatmul.bf16.gmra.mxu0 %v834
    %v854 = vpop.f32.mrf.mxu0
    %v855 = vadd.f32 %v33, %v854
    %v856 = vpop.f32.mrf.mxu0
    %v857 = vadd.f32 %v34, %v856
    %858 = vmatmul.bf16.gmra.mxu0 %v837
    %v859 = vpop.f32.mrf.mxu0
    %v860 = vadd.f32 %v35, %v859
    %v861 = vpop.f32.mrf.mxu0
    %v862 = vadd.f32 %v36, %v861
    %863 = vdwg.mxu0
    %v864 = vmax.f32 %v855, 0.0
    %v865 = vmax.f32 %v857, 0.0
    %v866 = vmax.f32 %v860, 0.0
    %v867 = vmax.f32 %v862, 0.0
    %vm868 = vcmask 261120
    %v870 = vsel %vm868, %v864, 0
    %v873 = vsel %vm868, %v865, 0
    %v876 = vsel %vm868, %v866, 0
    %v879 = vsel %vm868, %v867, 0
    %881 = vmatpush.msra.mxu0 0.0
    %882 = vmatpush.msra.mxu0 0.0
    %883 = vmatpush.msra.mxu0 0.0
    %884 = vmatpush.msra.mxu0 0.0
    %885 = vmatpush.msra.mxu0 0.0
    %886 = vmatpush.msra.mxu0 0.0
    %887 = vmatpush.msra.mxu0 0.0
    %888 = vmatpush.msra.mxu0 0.0
    %889 = vmatpush.msra.mxu0 0.0
    %890 = vmatpush.msra.mxu0 0.0
    %891 = vmatpush.msra.mxu0 0.0
    %892 = vmatpush.msra.mxu0 0.0
    %893 = vmatpush.msra.mxu0 %v48
    %894 = vmatpush.msra.mxu0 %v47
    %895 = vmatpush.msra.mxu0 %v46
    %896 = vmatpush.msra.mxu0 %v45
    %897 = vmatmul.f32.gmra.mxu0 %v870
    %v898 = vpop.f32.mrf.mxu0
    %v899 = vadd.f32 0.0, %v898
    %900 = vmatmul.f32.gmra.mxu0 %v873
    %v901 = vpop.f32.mrf.mxu0
    %v902 = vadd.f32 0.0, %v901
    %903 = vmatmul.f32.gmra.mxu0 %v876
    %v904 = vpop.f32.mrf.mxu0
    %v905 = vadd.f32 0.0, %v904
    %906 = vmatmul.f32.gmra.mxu0 %v879
    %v907 = vpop.f32.mrf.mxu0
    %v908 = vadd.f32 0.0, %v907
    %909 = vdwg.mxu0
    %914 = vrot.lane.b32.xlu0 %v899, 2
    %v915 = vpop.permute.xlu0 %914
    %916 = vrot.lane.b32.xlu0 %v902, 2
    %v917 = vpop.permute.xlu0 %916
    %918 = vrot.lane.b32.xlu0 %v905, 2
    %v919 = vpop.permute.xlu0 %918
    %920 = vrot.lane.b32.xlu0 %v908, 2
    %v921 = vpop.permute.xlu0 %920
    %v926 = vsub.f32 %v29, %v915
    %v927 = vsub.f32 %v30, %v917
    %v928 = vsub.f32 %v31, %v919
    %v929 = vsub.f32 %v32, %v921
    %v930 = vmul.f32 %v926, %v926
    %v931 = vmul.f32 %v927, %v927
    %v932 = vmul.f32 %v928, %v928
    %v933 = vmul.f32 %v929, %v929
    %938 = vrot.lane.b32.xlu0 %v930, 126
    %v939 = vpop.permute.xlu0 %938
    %940 = vrot.lane.b32.xlu0 %v931, 126
    %v941 = vpop.permute.xlu0 %940
    %942 = vrot.lane.b32.xlu0 %v932, 126
    %v943 = vpop.permute.xlu0 %942
    %944 = vrot.lane.b32.xlu0 %v933, 126
    %v945 = vpop.permute.xlu0 %944
    %v950 = vsel %vm799, %v939, 0.0
    %v951 = vsel %vm799, %v941, 0.0
    %v952 = vadd.f32 %v950, %v951
    %v953 = vsel %vm799, %v943, 0.0
    %v954 = vadd.f32 %v952, %v953
    %v955 = vsel %vm799, %v945, 0.0
    %v956 = vadd.f32 %v954, %v955
    %957 = vadd.xlane.f32.xlu0 %v956
    %v958 = vpop.xlane.xlu0 %957
    %v959 = vrot.slane %v958, 4
    %v960 = vadd.f32 %v958, %v959
    %v961 = vrot.slane %v960, 2
    %v962 = vadd.f32 %v960, %v961
    %v963 = vrot.slane %v962, 1
    %v964 = vadd.f32 %v962, %v963
    %s965 = vtos %v964
    %v966 = vrcp.pop 32.0
    %v967 = vmul.f32 32.0, %v966
    %v968 = vsub.f32 1.0, %v967
    %v969 = vmul.f32 %v966, %v968
    %v970 = vadd.f32 %v966, %v969
    %vm971 = vweird.f32 %v966
    %v972 = vsel %vm971, %v966, %v970
    %s973 = vtos %v972
    %s974 = smul.f32 %s965, %s973
    %v975 = vstv %s974
    %vm976 = vcmask 0
    %977 = vst.msk [vmem:[#allocation2] sm:$0x1] %vm976, %v975
    // Predicated region
    $region26: #{tpu_custom_call.1} parent=1 // pred_check
      _
    $region27: #{tpu_custom_call.1} parent=1 // pred_check_branch
      %979 = sbr.rel (0) target = $region29
    $region28: #{tpu_custom_call.1} parent=1 // pred_region
      %981 = vsyncadd [#allocation3], 0
      %s983 = sshll.u32 [#allocation2], 4
      %s984 = int_to_ptr.vmem [resolvable:$true] %s983
      %s985 = sshll.u32 %s6, 4
      %s986 = int_to_ptr.hbm [resolvable:$true] %s985
      %988 = dma.vmem_to_hbm [thread:$0]  %s984, 16, %s986, [#allocation3]
    $region29: #{tpu_custom_call.1} parent=1 // pred_fallthru
      _
    // Predicated region
    $region30: #{tpu_custom_call.1} parent=1 // pred_check
      _
    $region31: #{tpu_custom_call.1} parent=1 // pred_check_branch
      %990 = sbr.rel (0) target = $region33
    $region32: #{tpu_custom_call.1} parent=1 // pred_region
      %992 = dma.done [#allocation3], 16
    $region33: #{tpu_custom_call.1} parent=1 // pred_fallthru
      _
    %993 = vsyncpa [#allocation3], 1

</llo_original>
